<compile_context>
chip_gen: v6e
topology: v6e:2x2x1
jax: 0.10.0
libtpu: 0.0.40
codegen_flags: <defaults>
</compile_context>

<pallas_src>
import functools

import numpy as np
import jax
import jax.numpy as jnp
from jax.experimental import pallas as pl
from jax.experimental.pallas import tpu as pltpu


def _protocon_kernel(q_ref, p_ref, ql_ref, plab_ref, out_ref,
                     m_ref, l_ref, s_ref, pos_ref, *, inv_temp):
    """One (B-tile, N-tile) step of the online-softmax ProtoCon loss."""
    j = pl.program_id(1)  # N-tile index (reduction axis, innermost)

    @pl.when(j == 0)
    def _init():
        m_ref[...] = jnp.full(m_ref.shape, -jnp.inf, jnp.float32)
        l_ref[...] = jnp.zeros(l_ref.shape, jnp.float32)
        s_ref[...] = jnp.zeros(s_ref.shape, jnp.float32)
        pos_ref[...] = jnp.zeros(pos_ref.shape, jnp.float32)

    # MXU: [tq, D] x [tn, D] contracting D -> [tq, tn]; no transpose of the
    # prototype tile, operands stay in their native dtype, f32 accumulation.
    logits = jax.lax.dot_general(
        q_ref[...], p_ref[...],
        dimension_numbers=(((1,), (1,)), ((), ())),
        preferred_element_type=jnp.float32) * inv_temp            # [tq, tn]

    # mask[i, j] = (query_label[i] == prototype_label[j]); labels are small
    # non-negative integers, so the float32 equality is exact (< 2^24).
    mask = (ql_ref[...] == plab_ref[...]).astype(jnp.float32)     # [tq, tn]

    m_prev = m_ref[...]
    m_new = jnp.maximum(m_prev, jnp.max(logits, axis=1, keepdims=True))
    alpha = jnp.exp(m_prev - m_new)            # == 0 on the first tile (m_prev=-inf)

    # Running softmax denominator sum(exp(logits - m)).
    l_ref[...] = alpha * l_ref[...] + jnp.sum(jnp.exp(logits - m_new),
                                              axis=1, keepdims=True)

    # Running masked numerator sum(mask * (logits - m)); when the running max
    # moves, the already-accumulated sum is shifted by pos_prev * (m_new - m_prev).
    pos_prev = pos_ref[...]
    shift = jnp.where(pos_prev > 0.0, pos_prev * (m_new - m_prev), 0.0)
    s_ref[...] = (s_ref[...] - shift) + jnp.sum(mask * (logits - m_new),
                                                axis=1, keepdims=True)
    pos_ref[...] = pos_prev + jnp.sum(mask, axis=1, keepdims=True)
    m_ref[...] = m_new

    @pl.when(j == pl.num_programs(1) - 1)
    def _finalize():
        pos = pos_ref[...]
        pos_c = jnp.where(pos < 1e-6, jnp.ones_like(pos), pos)
        # sum(mask * log_prob) = sum(mask*(logits - m)) - pos * log(sum exp(logits - m))
        mean_log_prob_pos = (s_ref[...] - pos * jnp.log(l_ref[...])) / pos_c
        out_ref[...] = -mean_log_prob_pos                          # [tq, 1]


def _pick_block(total, preferred, align):
    """Largest `align`-multiple <= preferred that divides `total`; else the full dim."""
    if total <= preferred:
        return total
    if total % preferred == 0:
        return preferred
    b = (preferred // align) * align
    while b >= align:
        if total % b == 0:
            return b
        b -= align
    return total


def protocon_loss(query_features, query_labels, prototypes, n_other,
                  temperature=0.07, contrast_mode='all', base_temperature=0.07,
                  contrastive='Normal', block_q=None, block_n=None):
    """JAX/Pallas equivalent of ProtoConLoss.forward (returns a scalar loss)."""
    # contrastive != 'Normal' path in the reference is identical (the weighted
    # branch is commented out upstream); contrast_mode / base_temperature are
    # unused by the reference forward as well.
    B, D = query_features.shape
    N, Dp = prototypes.shape
    if D != Dp:
        raise ValueError('feature dims of query_features and prototypes differ')
    if query_labels.shape[0] != B:
        raise ValueError('Num of support_labels does not match num of support_features')

    # prototype_labels = cat([zeros(n_other), arange(1, N - n_other + 1)]).
    # Built host-side (numpy) so it constant-folds under jit — no per-call ops.
    proto_labels = jnp.asarray(
        np.concatenate([np.zeros((n_other,), np.float32),
                        np.arange(1, N - n_other + 1, dtype=np.float32)]
                       ).reshape(1, N))
    q_labels = query_labels.astype(jnp.float32).reshape(B, 1)

    tq = block_q if block_q is not None else _pick_block(B, 256, 8)
    tn = block_n if block_n is not None else _pick_block(N, 512, 128)
    assert B % tq == 0 and N % tn == 0, (B, tq, N, tn)
    nb, nn = B // tq, N // tn

    kernel = functools.partial(_protocon_kernel, inv_temp=1.0 / float(temperature))

    per_row = pl.pallas_call(
        kernel,
        out_shape=jax.ShapeDtypeStruct((B, 1), jnp.float32),
        grid=(nb, nn),
        in_specs=[
            pl.BlockSpec((tq, D), lambda i, j: (i, 0)),    # query features (native dtype)
            pl.BlockSpec((tn, D), lambda i, j: (j, 0)),    # prototypes     (native dtype)
            pl.BlockSpec((tq, 1), lambda i, j: (i, 0)),    # query labels   (f32)
            pl.BlockSpec((1, tn), lambda i, j: (0, j)),    # prototype labels (f32)
        ],
        out_specs=pl.BlockSpec((tq, 1), lambda i, j: (i, 0)),
        scratch_shapes=[
            pltpu.VMEM((tq, 1), jnp.float32),  # running max m
            pltpu.VMEM((tq, 1), jnp.float32),  # running denom l
            pltpu.VMEM((tq, 1), jnp.float32),  # running sum(mask*(logits-m))
            pltpu.VMEM((tq, 1), jnp.float32),  # running positive count
        ],
        compiler_params=pltpu.CompilerParams(
            dimension_semantics=("parallel", "arbitrary")),
    )(query_features, prototypes, q_labels, proto_labels)

    # Tiny final reduce; fuses into the surrounding jit.
    return jnp.mean(per_row)


def _reference_loss(query_features, query_labels, prototypes, n_other,
                    temperature=0.07):
    """Pure-JAX reference mirroring the PyTorch code exactly."""
    B = query_features.shape[0]
    N = prototypes.shape[0]
    proto_labels = jnp.concatenate(
        [jnp.zeros((n_other,), jnp.float32),
         jnp.arange(1, N - n_other + 1, dtype=jnp.float32)]).reshape(-1, 1)
    ql = query_labels.astype(jnp.float32).reshape(-1, 1)
    mask = (ql == proto_labels.T).astype(jnp.float32)
    adc = (query_features.astype(jnp.float32)
           @ prototypes.astype(jnp.float32).T) / temperature
    logits = adc - jnp.max(adc, axis=1, keepdims=True)
    exp_logits = jnp.exp(logits)
    log_prob = logits - jnp.log(jnp.sum(exp_logits, axis=1, keepdims=True))
    pos = jnp.sum(mask, axis=1)
    pos = jnp.where(pos < 1e-6, 1.0, pos)
    mlpp = jnp.sum(mask * log_prob, axis=1) / pos
    return jnp.mean(-mlpp.reshape(1, B))


if __name__ == "__main__":
    # --- Test 1: small shapes typical for the module, f32 inputs, single tile ---
    k1, k2, k3 = jax.random.split(jax.random.PRNGKey(0), 3)
    B, D, N, n_other = 8, 32, 8, 3          # prototype labels: [0,0,0,1,2,3,4,5]
    qf = jax.random.normal(k1, (B, D), dtype=jnp.float32)
    protos = jax.random.normal(k2, (N, D), dtype=jnp.float32)
    qlab = jax.random.randint(k3, (B,), 0, N - n_other + 1, dtype=jnp.int32)

    loss_fn = jax.jit(functools.partial(protocon_loss, n_other=n_other,
                                        temperature=0.07))
    loss = jax.block_until_ready(loss_fn(qf, qlab, protos))
    ref = _reference_loss(qf, qlab, protos, n_other, temperature=0.07)
    assert jnp.allclose(loss, ref, rtol=1e-5, atol=1e-5), (loss, ref)

    # --- Test 2: multi-tile grid (2 B-tiles x 2 N-tiles), bf16 inputs feeding the
    #             MXU natively; also exercises the "no positives" clamp path. ---
    k4, k5, k6 = jax.random.split(jax.random.PRNGKey(1), 3)
    B2, D2, N2, n_other2 = 16, 128, 256, 4
    qf2 = jax.random.normal(k4, (B2, D2), dtype=jnp.bfloat16)
    protos2 = jax.random.normal(k5, (N2, D2), dtype=jnp.bfloat16)
    qlab2 = jax.random.randint(k6, (B2,), 0, N2 - n_other2 + 1, dtype=jnp.int32)
    qlab2 = qlab2.at[0].set(10_000)          # label with no matching prototype

    loss_fn2 = jax.jit(functools.partial(protocon_loss, n_other=n_other2,
                                         temperature=1.0, block_q=8, block_n=128))
    loss2 = jax.block_until_ready(loss_fn2(qf2, qlab2, protos2))
    ref2 = _reference_loss(qf2, qlab2, protos2, n_other2, temperature=1.0)
    assert jnp.allclose(loss2, ref2, rtol=1e-3, atol=1e-3), (loss2, ref2)

    print("KERNEL_OK")
</pallas_src>

<mosaic_0001>
module attributes {stable_mosaic.version = 11 : i64} {
  func.func @_protocon_kernel(%arg0: i32, %arg1: i32, %arg2: memref<8x32xf32, #tpu.memory_space<vmem>>, %arg3: memref<8x32xf32, #tpu.memory_space<vmem>>, %arg4: memref<8x1xf32, #tpu.memory_space<vmem>>, %arg5: memref<1x8xf32, #tpu.memory_space<vmem>>, %arg6: memref<8x1xf32, #tpu.memory_space<vmem>>, %arg7: memref<8x1xf32, #tpu.memory_space<vmem>>, %arg8: memref<8x1xf32, #tpu.memory_space<vmem>>, %arg9: memref<8x1xf32, #tpu.memory_space<vmem>>, %arg10: memref<8x1xf32, #tpu.memory_space<vmem>>) attributes {dimension_semantics = [#tpu.dimension_semantics<parallel>, #tpu.dimension_semantics<arbitrary>], iteration_bounds = array<i64: 1, 1>, scalar_prefetch = 0 : i64, scratch_operands = 4 : i64, tpu.core_type = #tpu.core_type<tc>, window_params = [{transform_indices = @transform_0, window_bounds = array<i64: 8, 32>}, {transform_indices = @transform_1, window_bounds = array<i64: 8, 32>}, {transform_indices = @transform_2, window_bounds = array<i64: 8, 1>}, {transform_indices = @transform_3, window_bounds = array<i64: 1, 8>}, {transform_indices = @transform_4, window_bounds = array<i64: 8, 1>}]} {
    %c0_i32 = arith.constant 0 : i32
    %0 = arith.cmpi eq, %arg1, %c0_i32 : i32
    %1 = arith.extui %0 : i1 to i32
    %c0_i32_0 = arith.constant 0 : i32
    %2 = arith.cmpi ne, %1, %c0_i32_0 : i32
    scf.if %2 {
      %cst_33 = arith.constant 0xFF800000 : f32
      %54 = vector.broadcast %cst_33 : f32 to vector<8x1xf32>
      %c0_34 = arith.constant 0 : index
      %c0_35 = arith.constant 0 : index
      %55 = vector.load %arg7[%c0_34, %c0_35] : memref<8x1xf32, #tpu.memory_space<vmem>>, vector<8x1xf32>
      tpu.vector_store %arg7[%c0_34, %c0_35], %54 {strides = array<i32>} : memref<8x1xf32, #tpu.memory_space<vmem>>, vector<8x1xf32>,
      %cst_36 = arith.constant 0.000000e+00 : f32
      %56 = vector.broadcast %cst_36 : f32 to vector<8x1xf32>
      %c0_37 = arith.constant 0 : index
      %c0_38 = arith.constant 0 : index
      %57 = vector.load %arg8[%c0_37, %c0_38] : memref<8x1xf32, #tpu.memory_space<vmem>>, vector<8x1xf32>
      tpu.vector_store %arg8[%c0_37, %c0_38], %56 {strides = array<i32>} : memref<8x1xf32, #tpu.memory_space<vmem>>, vector<8x1xf32>,
      %cst_39 = arith.constant 0.000000e+00 : f32
      %58 = vector.broadcast %cst_39 : f32 to vector<8x1xf32>
      %c0_40 = arith.constant 0 : index
      %c0_41 = arith.constant 0 : index
      %59 = vector.load %arg9[%c0_40, %c0_41] : memref<8x1xf32, #tpu.memory_space<vmem>>, vector<8x1xf32>
      tpu.vector_store %arg9[%c0_40, %c0_41], %58 {strides = array<i32>} : memref<8x1xf32, #tpu.memory_space<vmem>>, vector<8x1xf32>,
      %cst_42 = arith.constant 0.000000e+00 : f32
      %60 = vector.broadcast %cst_42 : f32 to vector<8x1xf32>
      %c0_43 = arith.constant 0 : index
      %c0_44 = arith.constant 0 : index
      %61 = vector.load %arg10[%c0_43, %c0_44] : memref<8x1xf32, #tpu.memory_space<vmem>>, vector<8x1xf32>
      tpu.vector_store %arg10[%c0_43, %c0_44], %60 {strides = array<i32>} : memref<8x1xf32, #tpu.memory_space<vmem>>, vector<8x1xf32>,
    } else {
    }
    %c0 = arith.constant 0 : index
    %c0_1 = arith.constant 0 : index
    %3 = vector.load %arg2[%c0, %c0_1] : memref<8x32xf32, #tpu.memory_space<vmem>>, vector<8x32xf32>
    %c0_2 = arith.constant 0 : index
    %c0_3 = arith.constant 0 : index
    %4 = vector.load %arg3[%c0_2, %c0_3] : memref<8x32xf32, #tpu.memory_space<vmem>>, vector<8x32xf32>
    %cst = arith.constant dense<0.000000e+00> : vector<8x8xf32>
    %5 = tpu.matmul %3, %4, %cst {dimension_numbers = #tpu.dot_dimension_numbers<[1], [1], [0], [0], [0, 0, 1, 0], [], []>} : vector<8x32xf32>, vector<8x32xf32>, vector<8x8xf32> -> vector<8x8xf32>
    %cst_4 = arith.constant 14.2857141 : f32
    %6 = vector.broadcast %cst_4 : f32 to vector<8x8xf32>
    %7 = arith.mulf %5, %6 : vector<8x8xf32>
    %c0_5 = arith.constant 0 : index
    %c0_6 = arith.constant 0 : index
    %8 = vector.load %arg4[%c0_5, %c0_6] : memref<8x1xf32, #tpu.memory_space<vmem>>, vector<8x1xf32>
    %c0_7 = arith.constant 0 : index
    %c0_8 = arith.constant 0 : index
    %9 = vector.load %arg5[%c0_7, %c0_8] : memref<1x8xf32, #tpu.memory_space<vmem>>, vector<1x8xf32>
    %10 = vector.broadcast %8 : vector<8x1xf32> to vector<8x8xf32>
    %11 = vector.broadcast %9 : vector<1x8xf32> to vector<8x8xf32>
    %12 = arith.cmpf oeq, %10, %11 : vector<8x8xf32>
    %13 = arith.extui %12 : vector<8x8xi1> to vector<8x8xi32>
    %14 = arith.sitofp %13 : vector<8x8xi32> to vector<8x8xf32>
    %c0_9 = arith.constant 0 : index
    %c0_10 = arith.constant 0 : index
    %15 = vector.load %arg7[%c0_9, %c0_10] : memref<8x1xf32, #tpu.memory_space<vmem>>, vector<8x1xf32>
    %cst_11 = arith.constant dense<0xFF800000> : vector<8xf32>
    %16 = vector.multi_reduction <maximumf>, %7, %cst_11 [1] : vector<8x8xf32> to vector<8xf32>
    %17 = vector.shape_cast %16 : vector<8xf32> to vector<8x1xf32>
    %18 = arith.maximumf %15, %17 : vector<8x1xf32>
    %19 = arith.subf %15, %18 : vector<8x1xf32>
    %20 = math.exp %19 : vector<8x1xf32>
    %c0_12 = arith.constant 0 : index
    %c0_13 = arith.constant 0 : index
    %21 = vector.load %arg8[%c0_12, %c0_13] : memref<8x1xf32, #tpu.memory_space<vmem>>, vector<8x1xf32>
    %22 = arith.mulf %20, %21 : vector<8x1xf32>
    %23 = vector.broadcast %18 : vector<8x1xf32> to vector<8x8xf32>
    %24 = arith.subf %7, %23 : vector<8x8xf32>
    %25 = math.exp %24 : vector<8x8xf32>
    %cst_14 = arith.constant dense<0.000000e+00> : vector<8xf32>
    %26 = vector.multi_reduction <add>, %25, %cst_14 [1] : vector<8x8xf32> to vector<8xf32>
    %27 = vector.shape_cast %26 : vector<8xf32> to vector<8x1xf32>
    %28 = arith.addf %22, %27 : vector<8x1xf32>
    %c0_15 = arith.constant 0 : index
    %c0_16 = arith.constant 0 : index
    %29 = vector.load %arg8[%c0_15, %c0_16] : memref<8x1xf32, #tpu.memory_space<vmem>>, vector<8x1xf32>
    tpu.vector_store %arg8[%c0_15, %c0_16], %28 {strides = array<i32>} : memref<8x1xf32, #tpu.memory_space<vmem>>, vector<8x1xf32>,
    %c0_17 = arith.constant 0 : index
    %c0_18 = arith.constant 0 : index
    %30 = vector.load %arg10[%c0_17, %c0_18] : memref<8x1xf32, #tpu.memory_space<vmem>>, vector<8x1xf32>
    %cst_19 = arith.constant 0.000000e+00 : f32
    %31 = vector.broadcast %cst_19 : f32 to vector<8x1xf32>
    %32 = arith.cmpf ogt, %30, %31 : vector<8x1xf32>
    %33 = arith.subf %18, %15 : vector<8x1xf32>
    %34 = arith.mulf %30, %33 : vector<8x1xf32>
    %cst_20 = arith.constant 0.000000e+00 : f32
    %35 = vector.broadcast %cst_20 : f32 to vector<8x1xf32>
    %36 = arith.select %32, %34, %35 : vector<8x1xi1>, vector<8x1xf32>
    %c0_21 = arith.constant 0 : index
    %c0_22 = arith.constant 0 : index
    %37 = vector.load %arg9[%c0_21, %c0_22] : memref<8x1xf32, #tpu.memory_space<vmem>>, vector<8x1xf32>
    %38 = arith.subf %37, %36 : vector<8x1xf32>
    %39 = vector.broadcast %18 : vector<8x1xf32> to vector<8x8xf32>
    %40 = arith.subf %7, %39 : vector<8x8xf32>
    %41 = arith.mulf %14, %40 : vector<8x8xf32>
    %cst_23 = arith.constant dense<0.000000e+00> : vector<8xf32>
    %42 = vector.multi_reduction <add>, %41, %cst_23 [1] : vector<8x8xf32> to vector<8xf32>
    %43 = vector.shape_cast %42 : vector<8xf32> to vector<8x1xf32>
    %44 = arith.addf %38, %43 : vector<8x1xf32>
    %c0_24 = arith.constant 0 : index
    %c0_25 = arith.constant 0 : index
    %45 = vector.load %arg9[%c0_24, %c0_25] : memref<8x1xf32, #tpu.memory_space<vmem>>, vector<8x1xf32>
    tpu.vector_store %arg9[%c0_24, %c0_25], %44 {strides = array<i32>} : memref<8x1xf32, #tpu.memory_space<vmem>>, vector<8x1xf32>,
    %cst_26 = arith.constant dense<0.000000e+00> : vector<8xf32>
    %46 = vector.multi_reduction <add>, %14, %cst_26 [1] : vector<8x8xf32> to vector<8xf32>
    %47 = vector.shape_cast %46 : vector<8xf32> to vector<8x1xf32>
    %48 = arith.addf %30, %47 : vector<8x1xf32>
    %c0_27 = arith.constant 0 : index
    %c0_28 = arith.constant 0 : index
    %49 = vector.load %arg10[%c0_27, %c0_28] : memref<8x1xf32, #tpu.memory_space<vmem>>, vector<8x1xf32>
    tpu.vector_store %arg10[%c0_27, %c0_28], %48 {strides = array<i32>} : memref<8x1xf32, #tpu.memory_space<vmem>>, vector<8x1xf32>,
    %c0_29 = arith.constant 0 : index
    %c0_30 = arith.constant 0 : index
    %50 = vector.load %arg7[%c0_29, %c0_30] : memref<8x1xf32, #tpu.memory_space<vmem>>, vector<8x1xf32>
    tpu.vector_store %arg7[%c0_29, %c0_30], %18 {strides = array<i32>} : memref<8x1xf32, #tpu.memory_space<vmem>>, vector<8x1xf32>,
    %c0_i32_31 = arith.constant 0 : i32
    %51 = arith.cmpi eq, %arg1, %c0_i32_31 : i32
    %52 = arith.extui %51 : i1 to i32
    %c0_i32_32 = arith.constant 0 : i32
    %53 = arith.cmpi ne, %52, %c0_i32_32 : i32
    scf.if %53 {
      %c0_33 = arith.constant 0 : index
      %c0_34 = arith.constant 0 : index
      %54 = vector.load %arg10[%c0_33, %c0_34] : memref<8x1xf32, #tpu.memory_space<vmem>>, vector<8x1xf32>
      %cst_35 = arith.constant 9.99999997E-7 : f32
      %55 = vector.broadcast %cst_35 : f32 to vector<8x1xf32>
      %56 = arith.cmpf olt, %54, %55 : vector<8x1xf32>
      %cst_36 = arith.constant 1.000000e+00 : f32
      %57 = vector.broadcast %cst_36 : f32 to vector<8x1xf32>
      %58 = arith.select %56, %57, %54 : vector<8x1xi1>, vector<8x1xf32>
      %c0_37 = arith.constant 0 : index
      %c0_38 = arith.constant 0 : index
      %59 = vector.load %arg9[%c0_37, %c0_38] : memref<8x1xf32, #tpu.memory_space<vmem>>, vector<8x1xf32>
      %c0_39 = arith.constant 0 : index
      %c0_40 = arith.constant 0 : index
      %60 = vector.load %arg8[%c0_39, %c0_40] : memref<8x1xf32, #tpu.memory_space<vmem>>, vector<8x1xf32>
      %61 = math.log %60 : vector<8x1xf32>
      %62 = arith.mulf %54, %61 : vector<8x1xf32>
      %63 = arith.subf %59, %62 : vector<8x1xf32>
      %64 = arith.divf %63, %58 : vector<8x1xf32>
      %cst_41 = arith.constant 0.000000e+00 : f32
      %65 = vector.broadcast %cst_41 : f32 to vector<8x1xf32>
      %66 = arith.subf %65, %64 : vector<8x1xf32>
      %c0_42 = arith.constant 0 : index
      %c0_43 = arith.constant 0 : index
      %67 = vector.load %arg6[%c0_42, %c0_43] : memref<8x1xf32, #tpu.memory_space<vmem>>, vector<8x1xf32>
      tpu.vector_store %arg6[%c0_42, %c0_43], %66 {strides = array<i32>} : memref<8x1xf32, #tpu.memory_space<vmem>>, vector<8x1xf32>,
    } else {
    }
    return
  }
  func.func @transform_0(%arg0: i32, %arg1: i32) -> (i32, i32) {
    %c0_i32 = arith.constant 0 : i32
    %c0_i32_0 = arith.constant 0 : i32
    return %arg0, %c0_i32 : i32, i32
  }
  func.func @transform_1(%arg0: i32, %arg1: i32) -> (i32, i32) {
    %c0_i32 = arith.constant 0 : i32
    %c0_i32_0 = arith.constant 0 : i32
    return %arg1, %c0_i32 : i32, i32
  }
  func.func @transform_2(%arg0: i32, %arg1: i32) -> (i32, i32) {
    %c0_i32 = arith.constant 0 : i32
    %c0_i32_0 = arith.constant 0 : i32
    return %arg0, %c0_i32 : i32, i32
  }
  func.func @transform_3(%arg0: i32, %arg1: i32) -> (i32, i32) {
    %c0_i32 = arith.constant 0 : i32
    %c0_i32_0 = arith.constant 0 : i32
    return %c0_i32, %arg1 : i32, i32
  }
  func.func @transform_4(%arg0: i32, %arg1: i32) -> (i32, i32) {
    %c0_i32 = arith.constant 0 : i32
    %c0_i32_0 = arith.constant 0 : i32
    return %arg0, %c0_i32 : i32, i32
  }
}

</mosaic_0001>

<llo_original>
// kernel: protocon_loss.1
$region0: #{protocon_loss.1}
  #allocation0 [shape = 'u32[]', space=smem, size = 0x4, offset = 0x4, fixed_abs, tag = 'smem constant byte address 0x4 - core index']
  #allocation1 [shape = 'u32[144,128]{1,0:T(1,128)}', space=vmem, size = 0x12000, scoped, tag = 'internal scratch']
  #allocation2 [shape = 'f32[8,1]{1,0:T(8,128)}', space=vmem, size = 0x1000, scoped, tag = 'scratch operand']
  #allocation3 [shape = 'f32[8,1]{1,0:T(8,128)}', space=vmem, size = 0x1000, scoped, tag = 'scratch operand']
  #allocation4 [shape = 'f32[8,1]{1,0:T(8,128)}', space=vmem, size = 0x1000, scoped, tag = 'scratch operand']
  #allocation5 [shape = 'f32[8,1]{1,0:T(8,128)}', space=vmem, size = 0x1000, scoped, tag = 'scratch operand']
  %s0 = inlined_call_operand.vmem [shape: f32[8,32], index: 0, kind: input, shape index: {}]
  %s1 = inlined_call_operand.hbm [shape: f32[8,32], index: 1, kind: input, shape index: {}]
  %s2 = inlined_call_operand.vmem [shape: f32[8,1], index: 2, kind: input, shape index: {}]
  %s3 = inlined_call_operand.vmem [shape: f32[1,8], index: 3, kind: input, shape index: {}]
  %s4 = inlined_call_operand.vmem [shape: f32[8,1], index: 4, kind: output, shape index: {}]
  %s5 = sld [smem:[#allocation0]]
  $region38: #{protocon_loss.1} parent=0
    _
  %s7 = ssub.s32 1, %s5
  %s8 = scalar_select 0, %s7, %s5
  $region1: #{protocon_loss.1} parent=0
    #allocation6 [shape = 'u8[4096]{0}', space=vmem, size = 0x1000, scoped, tag = 'input window, operand 1, single buffered']
    #allocation7 [shape = 's32[1]{0}', space=sflag, size = 0x4, scoped, tag = 'scoped memory for protocon_loss.1']
    %9 = vsyncpa [#allocation7], 0
    // Predicated region
    $region2: #{protocon_loss.1} parent=1 // pred_check
      _
    $region3: #{protocon_loss.1} parent=1 // pred_check_branch
      %11 = sbr.rel (0) target = $region5
    $region4: #{protocon_loss.1} parent=1 // pred_region
      _
    $region5: #{protocon_loss.1} parent=1 // pred_fallthru
      _
    // Predicated region
    $region6: #{protocon_loss.1} parent=1 // pred_check
      _
    $region7: #{protocon_loss.1} parent=1 // pred_check_branch
      %13 = sbr.rel (0) target = $region9
    $region8: #{protocon_loss.1} parent=1 // pred_region
      %s15 = ssub.s32 128, 128
      %16 = vsyncadd [#allocation7], %s15
      %s18 = sshll.u32 [#allocation6], 4
      %s19 = int_to_ptr.vmem [resolvable:$true] %s18
      %21 = dma.hbm_to_vmem [thread:$0]  %s1, 128, %s19, [#allocation7]
    $region9: #{protocon_loss.1} parent=1 // pred_fallthru
      _
    // Predicated region
    $region10: #{protocon_loss.1} parent=1 // pred_check
      _
    $region11: #{protocon_loss.1} parent=1 // pred_check_branch
      %23 = sbr.rel (0) target = $region13
    $region12: #{protocon_loss.1} parent=1 // pred_region
      _
    $region13: #{protocon_loss.1} parent=1 // pred_fallthru
      _
    // Predicated region
    $region14: #{protocon_loss.1} parent=1 // pred_check
      _
    $region15: #{protocon_loss.1} parent=1 // pred_check_branch
      %25 = sbr.rel (0) target = $region17
    $region16: #{protocon_loss.1} parent=1 // pred_region
      _
    $region17: #{protocon_loss.1} parent=1 // pred_fallthru
      _
    // Predicated region
    $region18: #{protocon_loss.1} parent=1 // pred_check
      _
    $region19: #{protocon_loss.1} parent=1 // pred_check_branch
      %27 = sbr.rel (0) target = $region21
    $region20: #{protocon_loss.1} parent=1 // pred_region
      %28 = dma.done [#allocation7], 128
    $region21: #{protocon_loss.1} parent=1 // pred_fallthru
      _
    %p29 = scmp.eq.s32.totalorder 0, 0
    // Predicated region
    $region22: #{protocon_loss.1} parent=1 // pred_check
      %p30 = pneg %p29
    $region23: #{protocon_loss.1} parent=1 // pred_check_branch
      %32 = sbr.rel (%p30) target = $region25
    $region24: #{protocon_loss.1} parent=1 // pred_region
      %vm33 = vcmask 7168
      %34 = vst.msk [vmem:[#allocation2] sm:$0xff] %vm33, -inf
      %35 = vst.msk [vmem:[#allocation3] sm:$0xff] %vm33, 0.0
      %36 = vst.msk [vmem:[#allocation4] sm:$0xff] %vm33, 0.0
      %37 = vst.msk [vmem:[#allocation5] sm:$0xff] %vm33, 0.0
    $region25: #{protocon_loss.1} parent=1 // pred_fallthru
      _
    %v38 = vld [vmem:[%s0] sm:$0xff]
    %v39 = vld [vmem:[#allocation6] sm:$0xff]
    %vm40 = vcmask 261120
    %v42 = vsel %vm40, %v38, 0
    %v45 = vsel %vm40, %v39, 0
    %47 = vmatprep.subr.mxu0 0.0
    %48 = vmatpush1.xpose.msra.mxu0 0.0
    %49 = vmatprep.subr.mxu0 0.0
    %50 = vmatpush1.xpose.msra.mxu0 0.0
    %51 = vmatprep.subr.mxu0 0.0
    %52 = vmatpush1.xpose.msra.mxu0 0.0
    %53 = vmatprep.subr.mxu0 0.0
    %54 = vmatpush1.xpose.msra.mxu0 0.0
    %55 = vmatprep.subr.mxu0 0.0
    %56 = vmatpush1.xpose.msra.mxu0 0.0
    %57 = vmatprep.subr.mxu0 0.0
    %58 = vmatpush1.xpose.msra.mxu0 0.0
    %59 = vmatprep.subr.mxu0 0.0
    %60 = vmatpush1.xpose.msra.mxu0 0.0
    %61 = vmatprep.subr.mxu0 0.0
    %62 = vmatpush1.xpose.msra.mxu0 0.0
    %63 = vmatprep.subr.mxu0 0.0
    %64 = vmatpush1.xpose.msra.mxu0 0.0
    %65 = vmatprep.subr.mxu0 0.0
    %66 = vmatpush1.xpose.msra.mxu0 0.0
    %67 = vmatprep.subr.mxu0 0.0
    %68 = vmatpush1.xpose.msra.mxu0 0.0
    %69 = vmatprep.subr.mxu0 0.0
    %70 = vmatpush1.xpose.msra.mxu0 0.0
    %71 = vmatprep.subr.mxu0 0.0
    %72 = vmatpush1.xpose.msra.mxu0 0.0
    %73 = vmatprep.subr.mxu0 0.0
    %74 = vmatpush1.xpose.msra.mxu0 0.0
    %75 = vmatprep.subr.mxu0 0.0
    %76 = vmatpush1.xpose.msra.mxu0 0.0
    %77 = vmatprep.subr.mxu0 0.0
    %78 = vmatpush1.xpose.msra.mxu0 %v45
    %79 = vmatprep.subr.mxu0 0.0
    %80 = vmatpush2.xpose.msra.mxu0 0.0
    %81 = vmatprep.subr.mxu0 0.0
    %82 = vmatpush2.xpose.msra.mxu0 0.0
    %83 = vmatprep.subr.mxu0 0.0
    %84 = vmatpush2.xpose.msra.mxu0 0.0
    %85 = vmatprep.subr.mxu0 0.0
    %86 = vmatpush2.xpose.msra.mxu0 0.0
    %87 = vmatprep.subr.mxu0 0.0
    %88 = vmatpush2.xpose.msra.mxu0 0.0
    %89 = vmatprep.subr.mxu0 0.0
    %90 = vmatpush2.xpose.msra.mxu0 0.0
    %91 = vmatprep.subr.mxu0 0.0
    %92 = vmatpush2.xpose.msra.mxu0 0.0
    %93 = vmatprep.subr.mxu0 0.0
    %94 = vmatpush2.xpose.msra.mxu0 0.0
    %95 = vmatprep.subr.mxu0 0.0
    %96 = vmatpush2.xpose.msra.mxu0 0.0
    %97 = vmatprep.subr.mxu0 0.0
    %98 = vmatpush2.xpose.msra.mxu0 0.0
    %99 = vmatprep.subr.mxu0 0.0
    %100 = vmatpush2.xpose.msra.mxu0 0.0
    %101 = vmatprep.subr.mxu0 0.0
    %102 = vmatpush2.xpose.msra.mxu0 0.0
    %103 = vmatprep.subr.mxu0 0.0
    %104 = vmatpush2.xpose.msra.mxu0 0.0
    %105 = vmatprep.subr.mxu0 0.0
    %106 = vmatpush2.xpose.msra.mxu0 0.0
    %107 = vmatprep.subr.mxu0 0.0
    %108 = vmatpush2.xpose.msra.mxu0 0.0
    %109 = vmatprep.subr.mxu0 0.0
    %110 = vmatpush2.xpose.msra.mxu0 0.0
    %111 = vmatprep.mubr.f32.mxu0 0.0
    %112 = vmatmul.mubr.f32.gmra.mxu0 %v42
    %v113 = vpop.f32.mrf.mxu0
    %v114 = vadd.f32 0.0, %v113
    %v115 = vpop.f32.mrf.mxu0
    %116 = vdwg.mxu0
    %v117 = vmul.f32 %v114, 14.285714
    %v118 = vld [vmem:[%s2] sm:$0xff]
    %v119 = vld [vmem:[%s3] sm:$0x1]
    %121 = vset.pattern.permute.xlu0 0
    %122 = vperm.xlu0 %121, %v118
    %v123 = vpop.permute.xlu0 %122
    %v126 = vlaneseq
    %v127 = vshrl.u32 %v126, 7
    %v128 = vsub.s32 0, %v127
    %v129 = vrot.slane %v119, %v128
    %vm131 = vcmp.eq.f32.partialorder %v123, %v129
    %v132 = vsel %vm131, 1, 0
    %v133 = vcvt.s32.f32 %v132
    %v134 = vld [vmem:[#allocation2] sm:$0xff]
    %vm135 = vcmask 64512
    %v136 = vsel %vm135, %v117, -inf
    %137 = vmax.xlane.f32.xlu0 %v136
    %v138 = vpop.xlane.xlu0 %137
    %v139 = vmax.f32 %v134, %v138
    %v140 = vsub.f32 %v134, %v139
    %v141 = vmul.f32 %v140, 1.442695
    %v142 = vpow.pop %v141
    %v143 = vld [vmem:[#allocation3] sm:$0xff]
    %v144 = vmul.f32 %v142, %v143
    %146 = vset.pattern.permute.xlu0 0
    %147 = vperm.xlu0 %146, %v139
    %v148 = vpop.permute.xlu0 %147
    %v150 = vsub.f32 %v117, %v148
    %v151 = vmul.f32 %v150, 1.442695
    %v152 = vpow.pop %v151
    %v153 = vsel %vm135, %v152, 0.0
    %154 = vadd.xlane.f32.xlu0 %v153
    %v155 = vpop.xlane.xlu0 %154
    %v156 = vadd.f32 %v144, %v155
    %vm157 = vcmask 7168
    %158 = vst.msk [vmem:[#allocation3] sm:$0xff] %vm157, %v156
    %v159 = vld [vmem:[#allocation5] sm:$0xff]
    %vm160 = vcmp.gt.f32.partialorder %v159, 0.0
    %v161 = vsub.f32 %v139, %v134
    %v162 = vmul.f32 %v159, %v161
    %v163 = vsel %vm160, %v162, 0.0
    %v164 = vld [vmem:[#allocation4] sm:$0xff]
    %v165 = vsub.f32 %v164, %v163
    %v166 = vmul.f32 %v133, %v150
    %v167 = vsel %vm135, %v166, 0.0
    %168 = vadd.xlane.f32.xlu0 %v167
    %v169 = vpop.xlane.xlu0 %168
    %v170 = vadd.f32 %v165, %v169
    %171 = vst.msk [vmem:[#allocation4] sm:$0xff] %vm157, %v170
    %v172 = vsel %vm135, %v133, 0.0
    %173 = vadd.xlane.f32.xlu0 %v172
    %v174 = vpop.xlane.xlu0 %173
    %v175 = vadd.f32 %v159, %v174
    %176 = vst.msk [vmem:[#allocation5] sm:$0xff] %vm157, %v175
    %177 = vst.msk [vmem:[#allocation2] sm:$0xff] %vm157, %v139
    // Predicated region
    $region26: #{protocon_loss.1} parent=1 // pred_check
      %p178 = pneg %p29
    $region27: #{protocon_loss.1} parent=1 // pred_check_branch
      %180 = sbr.rel (%p178) target = $region29
    $region28: #{protocon_loss.1} parent=1 // pred_region
      %v181 = vld [vmem:[#allocation5] sm:$0xff]
      %vm182 = vcmp.lt.f32.partialorder %v181, 1e-06
      %v183 = vsel %vm182, 1.0, %v181
      %v184 = vld [vmem:[#allocation4] sm:$0xff]
      %v185 = vld [vmem:[#allocation3] sm:$0xff]
      %v186 = vlog2.pop %v185
      %v187 = vmul.f32 %v186, 0.6931472
      %v188 = vmul.f32 %v181, %v187
      %v189 = vsub.f32 %v184, %v188
      %v190 = vrcp.pop %v183
      %v191 = vmul.f32 %v189, %v190
      %v192 = vsub.f32 0.0, %v191
      %193 = vst.msk [vmem:[%s4] sm:$0xff] %vm157, %v192
    $region29: #{protocon_loss.1} parent=1 // pred_fallthru
      _
    // Predicated region
    $region30: #{protocon_loss.1} parent=1 // pred_check
      _
    $region31: #{protocon_loss.1} parent=1 // pred_check_branch
      %195 = sbr.rel (0) target = $region33
    $region32: #{protocon_loss.1} parent=1 // pred_region
      _
    $region33: #{protocon_loss.1} parent=1 // pred_fallthru
      _
    // Predicated region
    $region34: #{protocon_loss.1} parent=1 // pred_check
      _
    $region35: #{protocon_loss.1} parent=1 // pred_check_branch
      %197 = sbr.rel (0) target = $region37
    $region36: #{protocon_loss.1} parent=1 // pred_region
      _
    $region37: #{protocon_loss.1} parent=1 // pred_fallthru
      _
    %198 = vsyncpa [#allocation7], 1

</llo_original>
